<compile_context>
chip_gen: v7x
topology: tpu7x:2x2x1
jax: 0.10.0
libtpu: 0.0.40
codegen_flags: <defaults>
</compile_context>

<pallas_src>
import functools

import jax
import jax.numpy as jnp
from jax.experimental import pallas as pl
from jax.experimental.pallas import tpu as pltpu


def _proj_head_kernel(x_ref, w1_ref, b1_ref, w2_ref, b2_ref, o_ref):
    # x_ref : (C, T)   activation tile (channels on sublanes, pixels on lanes), stream dtype
    # w1_ref: (C, C)   BN-folded first 1x1 conv (rows = out channels), stream dtype
    # b1_ref: (C, 1)   BN-folded first bias, f32
    # w2_ref: (P, C)   second 1x1 conv (rows = out channels), stream dtype
    # b2_ref: (P, 1)   second bias, f32
    # o_ref : (P, T)   L2-normalized (over channel axis) output tile
    x = x_ref[...]

    # 1x1 conv #1 (BN folded). jnp.dot(w, x) is already the canonical (M,K)x(K,N)
    # MXU form (lhs contracts last dim, rhs first dim) -> no in-kernel weight transpose.
    h = jnp.dot(w1_ref[...], x, preferred_element_type=jnp.float32)
    h = jnp.maximum(h + b1_ref[...], 0.0)                      # bias + ReLU in f32 (VPU)

    # Cast back to the stream dtype so the 2nd matmul runs at native MXU rate
    # (no-op on the f32-stream path).
    h = h.astype(w2_ref.dtype)

    # 1x1 conv #2, f32 accumulation.
    y = jnp.dot(w2_ref[...], h, preferred_element_type=jnp.float32) + b2_ref[...]

    # F.normalize(p=2, dim=channel): y / max(||y||, 1e-12)
    # == y * rsqrt(max(sum(y^2), 1e-24)); rsqrt uses the otherwise-idle EUP slot,
    # the cross-sublane sum uses the XLU.
    sumsq = jnp.sum(y * y, axis=0, keepdims=True)              # (1, T)
    o_ref[...] = (y * jax.lax.rsqrt(jnp.maximum(sumsq, 1e-24))).astype(o_ref.dtype)


def _round_down(x, m):
    return (x // m) * m


def _tpu_hw_hints():
    """(num_tensorcores, vmem_capacity_bytes) with conservative fallbacks."""
    cores, cap = 1, 64 * 1024 * 1024
    try:
        info = pltpu.get_tpu_info()
        cap = int(info.vmem_capacity_bytes)
        for attr in ("num_cores", "core_count", "num_tensorcores"):
            v = getattr(info, attr, None)
            if isinstance(v, int) and v > 0:
                cores = v
                break
    except Exception:
        pass
    try:
        kind = jax.devices()[0].device_kind.lower()
        if "v7" in kind:                      # v7x: 2 TCs / chip, 64 MiB VMEM per TC
            cores = max(cores, 2)
            cap = min(cap, 64 * 1024 * 1024)
    except Exception:
        pass
    return cores, cap


@functools.partial(jax.jit, static_argnames=("tile_hw", "stream_dtype", "out_dtype"))
def projection_head_forward(x_nchw, params, tile_hw=2048,
                            stream_dtype=jnp.bfloat16, out_dtype=None):
    """x_nchw: (N, C, H, W). Returns (N, P, H, W) in `out_dtype` (default: stream_dtype)."""
    if out_dtype is None:
        out_dtype = stream_dtype
    N, C, H, W = x_nchw.shape
    S = H * W
    P = params["w2"].shape[0]

    # ---- Fold eval-mode BatchNorm (+ conv1 bias) into the first 1x1 conv (f32 math). ----
    inv_std = 1.0 / jnp.sqrt(params["running_var"] + params["bn_eps"])       # (C,)
    scale = params["gamma"] * inv_std                                        # (C,)
    w1f = (params["w1"] * scale[:, None]).astype(stream_dtype)               # (C, C)
    b1f = ((params["b1"] - params["running_mean"]) * scale
           + params["beta"]).astype(jnp.float32).reshape(C, 1)               # (C, 1) f32
    w2 = params["w2"].astype(stream_dtype)                                   # (P, C)
    b2 = params["b2"].astype(jnp.float32).reshape(P, 1)                      # (P, 1) f32

    # NCHW -> (N, C, H*W): free reshape; cast the streamed activations once.
    x = x_nchw.astype(stream_dtype).reshape(N, C, S)

    act_bytes = jnp.dtype(stream_dtype).itemsize
    out_bytes = jnp.dtype(out_dtype).itemsize

    # Single-buffer the constant-index weight/bias blocks once they are big enough to
    # matter for VMEM (irrelevant at tiny C/P; essential at production C/P on v7x).
    single_buffer_weights = (C * C + P * C) * act_bytes >= (2 << 20)
    wbuf = 1 if single_buffer_weights else 2

    # ---- Pixel-tile selection (lane axis). ----
    if S >= 128:
        thw = min(int(tile_hw), ((S + 127) // 128) * 128)
        thw = max(128, _round_down(thw, 128))
    else:
        thw = S  # block must equal the full (unaligned) trailing dim

    cores, vmem_cap = _tpu_hw_hints()
    # Explicit limit: escapes the 16/32 MiB scoped-VMEM defaults on v5e/v6e while
    # staying within v7x's 64 MiB physical VMEM.
    vmem_limit = min((vmem_cap * 3) // 4, 100 * 1024 * 1024)
    vmem_budget = vmem_limit - 2 * 1024 * 1024

    def vmem_est(t):
        acts = 2 * (C * act_bytes + P * out_bytes) * t               # double-buffered x / out tiles
        wts = wbuf * ((C * C + P * C) * act_bytes + (C + P) * 4)     # weights + f32 biases
        interm = 4 * (C + 2 * P) * t                                 # f32 h, y, y*y temporaries
        return acts + wts + interm

    while thw > 128 and vmem_est(thw) > vmem_budget:
        thw -= 128

    # Megacore (v7x): make sure the "parallel" grid has enough steps to feed all cores.
    if cores > 1 and S >= 128:
        min_steps = 2 * cores
        while thw > 128 and N * pl.cdiv(S, thw) < min_steps:
            thw -= 128

    grid = (N, pl.cdiv(S, thw))

    w_kwargs = dict(pipeline_mode=pl.Buffered(1)) if single_buffer_weights else {}

    out_flat = pl.pallas_call(
        _proj_head_kernel,
        out_shape=jax.ShapeDtypeStruct((N, P, S), out_dtype),
        grid_spec=pltpu.PrefetchScalarGridSpec(
            num_scalar_prefetch=0,
            grid=grid,
            in_specs=[
                pl.BlockSpec((None, C, thw), lambda n, j: (n, 0, j)),            # x tile
                pl.BlockSpec((C, C), lambda n, j: (0, 0), **w_kwargs),           # w1 (BN folded)
                pl.BlockSpec((C, 1), lambda n, j: (0, 0), **w_kwargs),           # b1 (BN folded)
                pl.BlockSpec((P, C), lambda n, j: (0, 0), **w_kwargs),           # w2
                pl.BlockSpec((P, 1), lambda n, j: (0, 0), **w_kwargs),           # b2
            ],
            out_specs=pl.BlockSpec((None, P, thw), lambda n, j: (n, 0, j)),
        ),
        compiler_params=pltpu.CompilerParams(
            dimension_semantics=("parallel", "parallel"),
            vmem_limit_bytes=int(vmem_limit),
        ),
    )(x, w1f, b1f, w2, b2)

    # (N, P, H*W) -> (N, P, H, W): free reshape.
    return out_flat.reshape(N, P, H, W)


def make_params(key, dim_in, proj_dim):
    """Deterministic synthetic parameters matching the PyTorch module's shapes."""
    k1, k2, k3, k4, k5, k6, k7, k8 = jax.random.split(key, 8)
    # Conv2d(dim_in, dim_in, 1): weight (out, in, 1, 1) stored as (out, in)
    w1 = jax.random.normal(k1, (dim_in, dim_in), jnp.float32) / jnp.sqrt(dim_in)
    b1 = 0.1 * jax.random.normal(k2, (dim_in,), jnp.float32)
    # BatchNorm2d(dim_in): eval-mode running stats + affine params
    gamma = 1.0 + 0.1 * jax.random.normal(k3, (dim_in,), jnp.float32)
    beta = 0.1 * jax.random.normal(k4, (dim_in,), jnp.float32)
    running_mean = 0.1 * jax.random.normal(k5, (dim_in,), jnp.float32)
    running_var = 1.0 + 0.1 * jax.random.uniform(k6, (dim_in,), jnp.float32)
    # Conv2d(dim_in, proj_dim, 1): weight (out, in, 1, 1) stored as (out, in)
    w2 = jax.random.normal(k7, (proj_dim, dim_in), jnp.float32) / jnp.sqrt(dim_in)
    b2 = 0.1 * jax.random.normal(k8, (proj_dim,), jnp.float32)
    return dict(w1=w1, b1=b1, gamma=gamma, beta=beta,
                running_mean=running_mean, running_var=running_var,
                bn_eps=1e-5, w2=w2, b2=b2)


def reference_forward(x_nchw, params):
    """Pure-JAX f32 reference mirroring the un-fused PyTorch math (eval mode)."""
    N, C, H, W = x_nchw.shape
    x = x_nchw.reshape(N, C, H * W)                                          # (N, C, S)
    h = jnp.einsum("oc,ncs->nos", params["w1"], x) + params["b1"][None, :, None]
    inv_std = 1.0 / jnp.sqrt(params["running_var"] + params["bn_eps"])
    h = (h - params["running_mean"][None, :, None]) * (params["gamma"] * inv_std)[None, :, None] \
        + params["beta"][None, :, None]
    h = jnp.maximum(h, 0.0)
    y = jnp.einsum("pc,ncs->nps", params["w2"], h) + params["b2"][None, :, None]
    denom = jnp.maximum(jnp.sqrt(jnp.sum(y * y, axis=1, keepdims=True)), 1e-12)
    y = y / denom
    P = y.shape[1]
    return y.reshape(N, P, H, W)


if __name__ == "__main__":
    key = jax.random.PRNGKey(0)
    kx, kp = jax.random.split(key)

    # Small shapes consistent with the module: x is NCHW, dim_in=32, proj_dim=64.
    N, C, H, W = 2, 32, 16, 16
    proj_dim = 64

    x = jax.random.normal(kx, (N, C, H, W), jnp.float32)
    params = make_params(kp, C, proj_dim)
    ref = reference_forward(x, params)

    # f32-stream path: exact parity with the un-fused reference math.
    out32 = jax.block_until_ready(
        projection_head_forward(x, params, stream_dtype=jnp.float32))
    assert out32.shape == (N, proj_dim, H, W)
    assert out32.dtype == jnp.float32
    assert jnp.allclose(out32, ref, atol=2e-5, rtol=2e-5), "f32 path mismatch vs reference"

    # bf16-stream path (default): halved HBM traffic, f32 accumulation / normalize.
    outbf = jax.block_until_ready(projection_head_forward(x, params))
    assert outbf.shape == (N, proj_dim, H, W)
    assert outbf.dtype == jnp.bfloat16
    assert jnp.allclose(outbf.astype(jnp.float32), ref, atol=3e-2, rtol=3e-2), \
        "bf16 path mismatch vs reference"

    print("KERNEL_OK")
</pallas_src>

<mosaic_0001>
module attributes {stable_mosaic.version = 11 : i64} {
  func.func @_proj_head_kernel(%arg0: i32, %arg1: i32, %arg2: memref<1x32x256xf32, #tpu.memory_space<vmem>>, %arg3: memref<32x32xf32, #tpu.memory_space<vmem>>, %arg4: memref<32x1xf32, #tpu.memory_space<vmem>>, %arg5: memref<64x32xf32, #tpu.memory_space<vmem>>, %arg6: memref<64x1xf32, #tpu.memory_space<vmem>>, %arg7: memref<1x64x256xf32, #tpu.memory_space<vmem>>) attributes {dimension_semantics = [#tpu.dimension_semantics<parallel>, #tpu.dimension_semantics<parallel>], iteration_bounds = array<i64: 2, 1>, scalar_prefetch = 0 : i64, scratch_operands = 0 : i64, tpu.core_type = #tpu.core_type<tc>, window_params = [{transform_indices = @transform_0, window_bounds = array<i64: 1, 32, 256>}, {pipeline_mode = #tpu.pipeline_mode<synchronous>, transform_indices = @transform_1, window_bounds = array<i64: 32, 32>}, {pipeline_mode = #tpu.pipeline_mode<synchronous>, transform_indices = @transform_2, window_bounds = array<i64: 32, 1>}, {pipeline_mode = #tpu.pipeline_mode<synchronous>, transform_indices = @transform_3, window_bounds = array<i64: 64, 32>}, {pipeline_mode = #tpu.pipeline_mode<synchronous>, transform_indices = @transform_4, window_bounds = array<i64: 64, 1>}, {transform_indices = @transform_5, window_bounds = array<i64: 1, 64, 256>}]} {
    %c0 = arith.constant 0 : index
    %c0_0 = arith.constant 0 : index
    %c0_1 = arith.constant 0 : index
    %0 = vector.load %arg2[%c0, %c0_0, %c0_1] : memref<1x32x256xf32, #tpu.memory_space<vmem>>, vector<1x32x256xf32>
    %1 = vector.shape_cast %0 : vector<1x32x256xf32> to vector<32x256xf32>
    %c0_2 = arith.constant 0 : index
    %c0_3 = arith.constant 0 : index
    %2 = vector.load %arg3[%c0_2, %c0_3] : memref<32x32xf32, #tpu.memory_space<vmem>>, vector<32x32xf32>
    %cst = arith.constant dense<0.000000e+00> : vector<32x256xf32>
    %3 = tpu.matmul %2, %1, %cst {dimension_numbers = #tpu.dot_dimension_numbers<[1], [0], [0], [1], [0, 0, 1, 1], [], []>} : vector<32x32xf32>, vector<32x256xf32>, vector<32x256xf32> -> vector<32x256xf32>
    %c0_4 = arith.constant 0 : index
    %c0_5 = arith.constant 0 : index
    %4 = vector.load %arg4[%c0_4, %c0_5] : memref<32x1xf32, #tpu.memory_space<vmem>>, vector<32x1xf32>
    %5 = vector.broadcast %4 : vector<32x1xf32> to vector<32x256xf32>
    %6 = arith.addf %3, %5 : vector<32x256xf32>
    %cst_6 = arith.constant 0.000000e+00 : f32
    %7 = vector.broadcast %cst_6 : f32 to vector<32x256xf32>
    %8 = arith.maximumf %6, %7 : vector<32x256xf32>
    %c0_7 = arith.constant 0 : index
    %c0_8 = arith.constant 0 : index
    %9 = vector.load %arg5[%c0_7, %c0_8] : memref<64x32xf32, #tpu.memory_space<vmem>>, vector<64x32xf32>
    %cst_9 = arith.constant dense<0.000000e+00> : vector<64x256xf32>
    %10 = tpu.matmul %9, %8, %cst_9 {dimension_numbers = #tpu.dot_dimension_numbers<[1], [0], [0], [1], [0, 0, 1, 1], [], []>} : vector<64x32xf32>, vector<32x256xf32>, vector<64x256xf32> -> vector<64x256xf32>
    %c0_10 = arith.constant 0 : index
    %c0_11 = arith.constant 0 : index
    %11 = vector.load %arg6[%c0_10, %c0_11] : memref<64x1xf32, #tpu.memory_space<vmem>>, vector<64x1xf32>
    %12 = vector.broadcast %11 : vector<64x1xf32> to vector<64x256xf32>
    %13 = arith.addf %10, %12 : vector<64x256xf32>
    %14 = arith.mulf %13, %13 : vector<64x256xf32>
    %cst_12 = arith.constant dense<0.000000e+00> : vector<256xf32>
    %15 = vector.multi_reduction <add>, %14, %cst_12 [0] : vector<64x256xf32> to vector<256xf32>
    %16 = vector.shape_cast %15 : vector<256xf32> to vector<1x256xf32>
    %cst_13 = arith.constant 1.000000e-24 : f32
    %17 = vector.broadcast %cst_13 : f32 to vector<1x256xf32>
    %18 = arith.maximumf %16, %17 : vector<1x256xf32>
    %19 = math.rsqrt %18 : vector<1x256xf32>
    %20 = vector.broadcast %19 : vector<1x256xf32> to vector<64x256xf32>
    %21 = arith.mulf %13, %20 : vector<64x256xf32>
    %c0_14 = arith.constant 0 : index
    %c0_15 = arith.constant 0 : index
    %c0_16 = arith.constant 0 : index
    %22 = vector.load %arg7[%c0_14, %c0_15, %c0_16] : memref<1x64x256xf32, #tpu.memory_space<vmem>>, vector<1x64x256xf32>
    %23 = vector.shape_cast %22 : vector<1x64x256xf32> to vector<64x256xf32>
    %24 = vector.shape_cast %21 : vector<64x256xf32> to vector<1x64x256xf32>
    tpu.vector_store %arg7[%c0_14, %c0_15, %c0_16], %24 {strides = array<i32>} : memref<1x64x256xf32, #tpu.memory_space<vmem>>, vector<1x64x256xf32>,
    return
  }
  func.func @transform_0(%arg0: i32, %arg1: i32) -> (i32, i32, i32) {
    %c0_i32 = arith.constant 0 : i32
    %c0_i32_0 = arith.constant 0 : i32
    return %arg0, %c0_i32, %arg1 : i32, i32, i32
  }
  func.func @transform_1(%arg0: i32, %arg1: i32) -> (i32, i32) {
    %c0_i32 = arith.constant 0 : i32
    %c0_i32_0 = arith.constant 0 : i32
    %c0_i32_1 = arith.constant 0 : i32
    return %c0_i32, %c0_i32_0 : i32, i32
  }
  func.func @transform_2(%arg0: i32, %arg1: i32) -> (i32, i32) {
    %c0_i32 = arith.constant 0 : i32
    %c0_i32_0 = arith.constant 0 : i32
    %c0_i32_1 = arith.constant 0 : i32
    return %c0_i32, %c0_i32_0 : i32, i32
  }
  func.func @transform_3(%arg0: i32, %arg1: i32) -> (i32, i32) {
    %c0_i32 = arith.constant 0 : i32
    %c0_i32_0 = arith.constant 0 : i32
    %c0_i32_1 = arith.constant 0 : i32
    return %c0_i32, %c0_i32_0 : i32, i32
  }
  func.func @transform_4(%arg0: i32, %arg1: i32) -> (i32, i32) {
    %c0_i32 = arith.constant 0 : i32
    %c0_i32_0 = arith.constant 0 : i32
    %c0_i32_1 = arith.constant 0 : i32
    return %c0_i32, %c0_i32_0 : i32, i32
  }
  func.func @transform_5(%arg0: i32, %arg1: i32) -> (i32, i32, i32) {
    %c0_i32 = arith.constant 0 : i32
    %c0_i32_0 = arith.constant 0 : i32
    return %arg0, %c0_i32, %arg1 : i32, i32, i32
  }
}

</mosaic_0001>

<llo_original>
// kernel: projection_head_forward.1
$region0: #{projection_head_forward.1}
  #allocation0 [shape = 'u32[]', space=smem, size = 0x4, offset = 0x4, fixed_abs, tag = 'smem constant byte address 0x4 - core index']
  #allocation1 [shape = 'u32[144,128]{1,0:T(1,128)}', space=vmem, size = 0x12000, scoped, tag = 'internal scratch']
  %s0 = inlined_call_operand.vmem [shape: f32[2,32,256], index: 0, kind: input, shape index: {}]
  %s1 = inlined_call_operand.vmem [shape: f32[32,32], index: 1, kind: input, shape index: {}]
  %s2 = inlined_call_operand.vmem [shape: f32[32,1], index: 2, kind: input, shape index: {}]
  %s3 = inlined_call_operand.vmem [shape: f32[64,32], index: 3, kind: input, shape index: {}]
  %s4 = inlined_call_operand.vmem [shape: f32[64,1], index: 4, kind: input, shape index: {}]
  %s5 = inlined_call_operand.vmem [shape: f32[2,64,256], index: 5, kind: output, shape index: {}]
  %s6 = sld [smem:[#allocation0]]
  $region53: #{projection_head_forward.1} parent=0
    _
  %s8 = ssub.s32 1, %s6
  %s9 = scalar_select 0, %s8, %s6
  loop: start=0, step=1, limit=4
  $region2: #{projection_head_forward.1} parent=0 // loop_pre_header
    _
  $region3: #{projection_head_forward.1} parent=0 // loop_header
    %s11 = sphi 0, %s15
    %p12 = scmp.ge.s32.totalorder %s11, 4
    %s18 = sphi 0, %s30
    %s19 = sphi 0, %s26
    %s20 = sphi 0, %s18
    %s21 = sphi 0, %s19
    %s22 = sphi 0, %s20
    %s23 = sphi 0, %s21
    %s35 = sphi 0, %s37
    %s38 = sphi 0, %s35
    %s39 = sphi 0, %s38
    %s55 = sphi 0, %s39
    %s59 = sphi 0, %s59
    %s61 = sphi 0, %s59
    %s62 = sphi 0, %s61
    %s76 = sphi 0, %s62
    %s80 = sphi 0, %s80
    %s82 = sphi 0, %s80
    %s83 = sphi 0, %s82
    %s97 = sphi 0, %s83
    %s101 = sphi 0, %s101
    %s103 = sphi 0, %s101
    %s104 = sphi 0, %s103
    %s118 = sphi 0, %s104
    %s122 = sphi 0, %s122
    %s124 = sphi 0, %s122
    %s125 = sphi 0, %s124
    %s139 = sphi 0, %s125
    %s147 = sphi 0, %s149
    %s150 = sphi 0, %s147
    %s151 = sphi 0, %s150
    %s167 = sphi 0, %s151
  $region4: #{projection_head_forward.1} parent=0 // loop_header_branch
    %14 = sbr.rel (%p12) target = $region8
  $region5: #{projection_head_forward.1} parent=0 // loop_body
    %s16 = ssub.s32 %s11, 1
    %s17 = ssub.s32 %s11, 2
    %s24 = sadd.s32 1, %s19
    %p25 = scmp.ge.s32.totalorder %s24, 1
    %s26 = scalar_select %p25, 0, %s24
    %s27 = sadd.s32 1, %s18
    %s28 = scalar_select %p25, %s27, %s18
    %p29 = scmp.ge.s32.totalorder %s28, 2
    %s30 = scalar_select %p29, 0, %s28
    %s31 = ssub.s32 %s18, %s30
    %s32 = ssub.s32 %s19, %s26
    %s33 = sor.u32 %s31, %s32
    %p34 = scmp.eq.s32.totalorder %s33, 0
    %s36 = sadd.s32 %s35, 1
    %s37 = scalar_select %p34, %s35, %s36
    %p40 = pneg %p34
    %p41 = scmp.eq.s32.totalorder %s11, 1
    %p42 = por %p40, %p41
    %p43 = scmp.ne.s32.totalorder %s35, %s38
    %p44 = scmp.eq.s32.totalorder %s11, 0
    %p45 = por %p43, %p44
    %p46 = scmp.ne.s32.totalorder %s35, %s38
    %p47 = scmp.eq.s32.totalorder %s16, 1
    %p48 = por %p46, %p47
    %p49 = scmp.ne.s32.totalorder %s38, %s39
    %p50 = scmp.eq.s32.totalorder %s16, 0
    %p51 = por %p49, %p50
    %p52 = scmp.ne.s32.totalorder %s38, %s39
    %p53 = scmp.eq.s32.totalorder %s17, 1
    %p54 = por %p52, %p53
    %p56 = scmp.ne.s32.totalorder %s39, %s55
    %p57 = scmp.eq.s32.totalorder %s17, 0
    %p58 = por %p56, %p57
    %s60 = sadd.s32 %s59, 1
    %p63 = scmp.eq.s32.totalorder %s11, 1
    %p64 = scmp.ne.s32.totalorder %s59, %s61
    %p65 = scmp.eq.s32.totalorder %s11, 0
    %p66 = por %p64, %p65
    %p67 = scmp.ne.s32.totalorder %s59, %s61
    %p68 = scmp.eq.s32.totalorder %s16, 1
    %p69 = por %p67, %p68
    %p70 = scmp.ne.s32.totalorder %s61, %s62
    %p71 = scmp.eq.s32.totalorder %s16, 0
    %p72 = por %p70, %p71
    %p73 = scmp.ne.s32.totalorder %s61, %s62
    %p74 = scmp.eq.s32.totalorder %s17, 1
    %p75 = por %p73, %p74
    %p77 = scmp.ne.s32.totalorder %s62, %s76
    %p78 = scmp.eq.s32.totalorder %s17, 0
    %p79 = por %p77, %p78
    %s81 = sadd.s32 %s80, 1
    %p84 = scmp.eq.s32.totalorder %s11, 1
    %p85 = scmp.ne.s32.totalorder %s80, %s82
    %p86 = scmp.eq.s32.totalorder %s11, 0
    %p87 = por %p85, %p86
    %p88 = scmp.ne.s32.totalorder %s80, %s82
    %p89 = scmp.eq.s32.totalorder %s16, 1
    %p90 = por %p88, %p89
    %p91 = scmp.ne.s32.totalorder %s82, %s83
    %p92 = scmp.eq.s32.totalorder %s16, 0
    %p93 = por %p91, %p92
    %p94 = scmp.ne.s32.totalorder %s82, %s83
    %p95 = scmp.eq.s32.totalorder %s17, 1
    %p96 = por %p94, %p95
    %p98 = scmp.ne.s32.totalorder %s83, %s97
    %p99 = scmp.eq.s32.totalorder %s17, 0
    %p100 = por %p98, %p99
    %s102 = sadd.s32 %s101, 1
    %p105 = scmp.eq.s32.totalorder %s11, 1
    %p106 = scmp.ne.s32.totalorder %s101, %s103
    %p107 = scmp.eq.s32.totalorder %s11, 0
    %p108 = por %p106, %p107
    %p109 = scmp.ne.s32.totalorder %s101, %s103
    %p110 = scmp.eq.s32.totalorder %s16, 1
    %p111 = por %p109, %p110
    %p112 = scmp.ne.s32.totalorder %s103, %s104
    %p113 = scmp.eq.s32.totalorder %s16, 0
    %p114 = por %p112, %p113
    %p115 = scmp.ne.s32.totalorder %s103, %s104
    %p116 = scmp.eq.s32.totalorder %s17, 1
    %p117 = por %p115, %p116
    %p119 = scmp.ne.s32.totalorder %s104, %s118
    %p120 = scmp.eq.s32.totalorder %s17, 0
    %p121 = por %p119, %p120
    %s123 = sadd.s32 %s122, 1
    %p126 = scmp.eq.s32.totalorder %s11, 1
    %p127 = scmp.ne.s32.totalorder %s122, %s124
    %p128 = scmp.eq.s32.totalorder %s11, 0
    %p129 = por %p127, %p128
    %p130 = scmp.ne.s32.totalorder %s122, %s124
    %p131 = scmp.eq.s32.totalorder %s16, 1
    %p132 = por %p130, %p131
    %p133 = scmp.ne.s32.totalorder %s124, %s125
    %p134 = scmp.eq.s32.totalorder %s16, 0
    %p135 = por %p133, %p134
    %p136 = scmp.ne.s32.totalorder %s124, %s125
    %p137 = scmp.eq.s32.totalorder %s17, 1
    %p138 = por %p136, %p137
    %p140 = scmp.ne.s32.totalorder %s125, %s139
    %p141 = scmp.eq.s32.totalorder %s17, 0
    %p142 = por %p140, %p141
    %s143 = ssub.s32 %s18, %s30
    %s144 = ssub.s32 %s19, %s26
    %s145 = sor.u32 %s143, %s144
    %p146 = scmp.eq.s32.totalorder %s145, 0
    %s148 = sadd.s32 %s147, 1
    %s149 = scalar_select %p146, %s147, %s148
    %p152 = pneg %p146
    %p153 = scmp.eq.s32.totalorder %s11, 1
    %p154 = por %p152, %p153
    %p155 = scmp.ne.s32.totalorder %s147, %s150
    %p156 = scmp.eq.s32.totalorder %s11, 0
    %p157 = por %p155, %p156
    %p158 = scmp.ne.s32.totalorder %s147, %s150
    %p159 = scmp.eq.s32.totalorder %s16, 1
    %p160 = por %p158, %p159
    %p161 = scmp.ne.s32.totalorder %s150, %s151
    %p162 = scmp.eq.s32.totalorder %s16, 0
    %p163 = por %p161, %p162
    %p164 = scmp.ne.s32.totalorder %s150, %s151
    %p165 = scmp.eq.s32.totalorder %s17, 1
    %p166 = por %p164, %p165
    %p168 = scmp.ne.s32.totalorder %s151, %s167
    %p169 = scmp.eq.s32.totalorder %s17, 0
    %p170 = por %p168, %p169
    %p171 = scmp.le.s32.totalorder 1, %s11
    %p172 = scmp.lt.s32.totalorder %s11, 3
    %p173 = pnand %p171, %p172
    %p174 = pneg %p173
    // Predicated region
    $region9: #{projection_head_forward.1} parent=5 // pred_check
      _
    $region10: #{projection_head_forward.1} parent=5 // pred_check_branch
      %176 = sbr.rel (%p173) target = $region12
    $region11: #{projection_head_forward.1} parent=5 // pred_region
      %s177 = ssub.s32 %s11, 1
      // Predicated region
      $region13: #{projection_head_forward.1} parent=11 // pred_check
        %p178 = pneg %p72
      $region14: #{projection_head_forward.1} parent=11 // pred_check_branch
        %180 = sbr.rel (%p178) target = $region16
      $region15: #{projection_head_forward.1} parent=11 // pred_region
        _
      $region16: #{projection_head_forward.1} parent=11 // pred_fallthru
        _
      // Predicated region
      $region17: #{projection_head_forward.1} parent=11 // pred_check
        %p181 = pneg %p93
      $region18: #{projection_head_forward.1} parent=11 // pred_check_branch
        %183 = sbr.rel (%p181) target = $region20
      $region19: #{projection_head_forward.1} parent=11 // pred_region
        _
      $region20: #{projection_head_forward.1} parent=11 // pred_fallthru
        _
      // Predicated region
      $region21: #{projection_head_forward.1} parent=11 // pred_check
        %p184 = pneg %p114
      $region22: #{projection_head_forward.1} parent=11 // pred_check_branch
        %186 = sbr.rel (%p184) target = $region24
      $region23: #{projection_head_forward.1} parent=11 // pred_region
        _
      $region24: #{projection_head_forward.1} parent=11 // pred_fallthru
        _
      // Predicated region
      $region25: #{projection_head_forward.1} parent=11 // pred_check
        %p187 = pneg %p135
      $region26: #{projection_head_forward.1} parent=11 // pred_check_branch
        %189 = sbr.rel (%p187) target = $region28
      $region27: #{projection_head_forward.1} parent=11 // pred_region
        _
      $region28: #{projection_head_forward.1} parent=11 // pred_fallthru
        _
    $region12: #{projection_head_forward.1} parent=5 // pred_fallthru
      _
    %p190 = scmp.lt.s32.totalorder %s11, 2
    // Predicated region
    $region29: #{projection_head_forward.1} parent=5 // pred_check
      %p191 = pneg %p190
    $region30: #{projection_head_forward.1} parent=5 // pred_check_branch
      %193 = sbr.rel (%p191) target = $region32
    $region31: #{projection_head_forward.1} parent=5 // pred_region
      // Predicated region
      $region33: #{projection_head_forward.1} parent=31 // pred_check
        %p194 = pneg %p45
      $region34: #{projection_head_forward.1} parent=31 // pred_check_branch
        %196 = sbr.rel (%p194) target = $region36
      $region35: #{projection_head_forward.1} parent=31 // pred_region
        %s197 = smul.u32 2, %s19
        %p198 = scmp.lt.s32.totalorder %s18, 1
        %s199 = scalar_select %p198, %s18, 1
        %p200 = scmp.lt.s32.totalorder %s197, 1
        %s201 = scalar_select %p200, %s197, 1
        %s202 = smul.addr %s199, 8
        %s203 = sadd.s32 %s201, %s202
        %s204 = smul.addr %s203, 8
        %s205 = scalar_lea.vmem %s0, %s204
        %s206 = smul.u32 2, %s19
      $region36: #{projection_head_forward.1} parent=31 // pred_fallthru
        _
    $region32: #{projection_head_forward.1} parent=5 // pred_fallthru
      _
    %p207 = scmp.le.s32.totalorder 1, %s11
    %p208 = scmp.lt.s32.totalorder %s11, 3
    %p209 = pnand %p207, %p208
    %p210 = pneg %p209
    // Predicated region
    $region37: #{projection_head_forward.1} parent=5 // pred_check
      _
    $region38: #{projection_head_forward.1} parent=5 // pred_check_branch
      %212 = sbr.rel (%p209) target = $region40
    $region39: #{projection_head_forward.1} parent=5 // pred_region
      %s213 = ssub.s32 %s11, 1
      %s214 = smul.u32 2, %s21
      %p215 = scmp.lt.s32.totalorder %s20, 1
      %s216 = scalar_select %p215, %s20, 1
      %p217 = scmp.lt.s32.totalorder %s214, 1
      %s218 = scalar_select %p217, %s214, 1
      %s219 = smul.addr %s216, 8
      %s220 = sadd.s32 %s218, %s219
      %s221 = smul.addr %s220, 8
      %s222 = scalar_lea.vmem %s0, %s221
      %p223 = pneg %p51
      %p224 = pneg %p48
      %p225 = pneg %p72
      %p226 = pneg %p69
      %p227 = pneg %p93
      %p228 = pneg %p90
      %p229 = pneg %p114
      %p230 = pneg %p111
      %p231 = pneg %p135
      %p232 = pneg %p132
      %p233 = pneg %p163
      %p234 = pneg %p160
      %s235 = smul.u32 2, %s21
      %p236 = scmp.lt.s32.totalorder %s20, 1
      %s237 = scalar_select %p236, %s20, 1
      %p238 = scmp.lt.s32.totalorder %s235, 1
      %s239 = scalar_select %p238, %s235, 1
      %s240 = smul.addr %s237, 16
      %s241 = sadd.s32 %s239, %s240
      %s242 = smul.addr %s241, 8
      %s243 = scalar_lea.vmem %s5, %s242
      %s244 = smul.u32 2, %s21
      %p245 = scmp.lt.s32.totalorder %s20, 1
      %s246 = scalar_select %p245, %s20, 1
      %p247 = scmp.lt.s32.totalorder %s244, 1
      %s248 = scalar_select %p247, %s244, 1
      %s249 = smul.addr %s246, 8
      %s250 = sadd.s32 %s248, %s249
      %s251 = smul.addr %s250, 8
      %s252 = scalar_lea.vmem %s0, %s251
      %s253 = smul.u32 2, %s21
      %s254 = smul.u32 2, %s21
      %p255 = scmp.lt.s32.totalorder %s20, 1
      %s256 = scalar_select %p255, %s20, 1
      %p257 = scmp.lt.s32.totalorder %s254, 1
      %s258 = scalar_select %p257, %s254, 1
      %s259 = smul.addr %s256, 16
      %s260 = sadd.s32 %s258, %s259
      %s261 = smul.addr %s260, 8
      %s262 = scalar_lea.vmem %s5, %s261
      %s263 = smul.u32 2, %s21
      %v264 = vld [vmem:[%s252] sm:$0xff]
      %v265 = vld [vmem:[%s252 + $0x8] sm:$0xff]
      %v266 = vld [vmem:[%s252 + $0x10] sm:$0xff]
      %v267 = vld [vmem:[%s252 + $0x18] sm:$0xff]
      %v268 = vld [vmem:[%s252 + $0x20] sm:$0xff]
      %v269 = vld [vmem:[%s252 + $0x28] sm:$0xff]
      %v270 = vld [vmem:[%s252 + $0x30] sm:$0xff]
      %v271 = vld [vmem:[%s252 + $0x38] sm:$0xff]
      %v272 = vld [vmem:[%s1] sm:$0xff]
      %v273 = vld [vmem:[%s1 + $0x8] sm:$0xff]
      %v274 = vld [vmem:[%s1 + $0x10] sm:$0xff]
      %v275 = vld [vmem:[%s1 + $0x18] sm:$0xff]
      %v276 = vld [vmem:[%s2] sm:$0xff]
      %v277 = vld [vmem:[%s2 + $0x8] sm:$0xff]
      %v278 = vld [vmem:[%s2 + $0x10] sm:$0xff]
      %v279 = vld [vmem:[%s2 + $0x18] sm:$0xff]
      %281 = vset.pattern.permute.xlu0 0
      %282 = vperm.xlu0 %281, %v276
      %v283 = vpop.permute.xlu0 %282
      %286 = vset.pattern.permute.xlu0 0
      %287 = vperm.xlu0 %286, %v277
      %v288 = vpop.permute.xlu0 %287
      %291 = vset.pattern.permute.xlu0 0
      %292 = vperm.xlu0 %291, %v278
      %v293 = vpop.permute.xlu0 %292
      %296 = vset.pattern.permute.xlu0 0
      %297 = vperm.xlu0 %296, %v279
      %v298 = vpop.permute.xlu0 %297
      %vm300 = vcmask 261120
      %v302 = vsel %vm300, %v272, 0
      %v305 = vsel %vm300, %v273, 0
      %v308 = vsel %vm300, %v274, 0
      %v311 = vsel %vm300, %v275, 0
      %313 = vmatprep.subr.mxu0 %v265
      %314 = vmatpush1.msra.mxu0 %v264
      %315 = vmatprep.subr.mxu0 %v267
      %316 = vmatpush1.msra.mxu0 %v266
      %317 = vmatprep.subr.mxu0 %v269
      %318 = vmatpush1.msra.mxu0 %v268
      %319 = vmatprep.subr.mxu0 %v271
      %320 = vmatpush1.msra.mxu0 %v270
      %321 = vmatprep.subr.mxu0 0.0
      %322 = vmatpush1.msra.mxu0 0.0
      %323 = vmatprep.subr.mxu0 0.0
      %324 = vmatpush1.msra.mxu0 0.0
      %325 = vmatprep.subr.mxu0 0.0
      %326 = vmatpush1.msra.mxu0 0.0
      %327 = vmatprep.subr.mxu0 0.0
      %328 = vmatpush1.msra.mxu0 0.0
      %329 = vmatprep.subr.mxu0 0.0
      %330 = vmatpush1.msra.mxu0 0.0
      %331 = vmatprep.subr.mxu0 0.0
      %332 = vmatpush1.msra.mxu0 0.0
      %333 = vmatprep.subr.mxu0 0.0
      %334 = vmatpush1.msra.mxu0 0.0
      %335 = vmatprep.subr.mxu0 0.0
      %336 = vmatpush1.msra.mxu0 0.0
      %337 = vmatprep.subr.mxu0 0.0
      %338 = vmatpush1.msra.mxu0 0.0
      %339 = vmatprep.subr.mxu0 0.0
      %340 = vmatpush1.msra.mxu0 0.0
      %341 = vmatprep.subr.mxu0 0.0
      %342 = vmatpush1.msra.mxu0 0.0
      %343 = vmatprep.subr.mxu0 0.0
      %344 = vmatpush1.msra.mxu0 0.0
      %345 = vmatprep.subr.mxu0 0.0
      %346 = vmatpush1.msra.mxu0 0.0
      %347 = vmatprep.subr.mxu0 0.0
      %348 = vmatpush1.msra.mxu0 0.0
      %349 = vmatprep.subr.mxu0 0.0
      %350 = vmatpush1.msra.mxu0 0.0
      %351 = vmatprep.subr.mxu0 0.0
      %352 = vmatpush1.msra.mxu0 0.0
      %353 = vmatprep.subr.mxu0 0.0
      %354 = vmatpush1.msra.mxu0 0.0
      %355 = vmatprep.subr.mxu0 0.0
      %356 = vmatpush1.msra.mxu0 0.0
      %357 = vmatprep.subr.mxu0 0.0
      %358 = vmatpush1.msra.mxu0 0.0
      %359 = vmatprep.subr.mxu0 0.0
      %360 = vmatpush1.msra.mxu0 0.0
      %361 = vmatprep.subr.mxu0 0.0
      %362 = vmatpush1.msra.mxu0 0.0
      %363 = vmatprep.subr.mxu0 0.0
      %364 = vmatpush1.msra.mxu0 0.0
      %365 = vmatprep.subr.mxu0 0.0
      %366 = vmatpush1.msra.mxu0 0.0
      %367 = vmatprep.subr.mxu0 0.0
      %368 = vmatpush1.msra.mxu0 0.0
      %369 = vmatprep.subr.mxu0 0.0
      %370 = vmatpush1.msra.mxu0 0.0
      %371 = vmatprep.subr.mxu0 0.0
      %372 = vmatpush1.msra.mxu0 0.0
      %373 = vmatprep.subr.mxu0 0.0
      %374 = vmatpush1.msra.mxu0 0.0
      %375 = vmatprep.subr.mxu0 0.0
      %376 = vmatpush1.msra.mxu0 0.0
      %377 = vmatprep.mubr.f32.mxu0 0.0
      %378 = vmatmul.mubr.f32.gmra.mrb[0].mxu0 %v302
      %v379 = vpop.f32.mrb[0].mxu0
      %v380 = vadd.f32 %v283, %v379
      %v381 = vpop.f32.mrb[0].mxu0
      %v382 = vadd.f32 %v283, %v381
      %383 = vmatprep.mubr.f32.mxu0 0.0
      %384 = vmatmul.mubr.f32.gmra.mrb[0].mxu0 %v305
      %v385 = vpop.f32.mrb[0].mxu0
      %v386 = vadd.f32 %v288, %v385
      %v387 = vpop.f32.mrb[0].mxu0
      %v388 = vadd.f32 %v288, %v387
      %389 = vmatprep.mubr.f32.mxu0 0.0
      %390 = vmatmul.mubr.f32.gmra.mrb[0].mxu0 %v308
      %v391 = vpop.f32.mrb[0].mxu0
      %v392 = vadd.f32 %v293, %v391
      %v393 = vpop.f32.mrb[0].mxu0
      %v394 = vadd.f32 %v293, %v393
      %395 = vmatprep.mubr.f32.mxu0 0.0
      %396 = vmatmul.mubr.f32.gmra.mrb[0].mxu0 %v311
      %v397 = vpop.f32.mrb[0].mxu0
      %v398 = vadd.f32 %v298, %v397
      %v399 = vpop.f32.mrb[0].mxu0
      %v400 = vadd.f32 %v298, %v399
      %401 = vdwg.mxu0
      %v402 = vmax.f32 %v380, 0.0
      %v403 = vmax.f32 %v382, 0.0
      %v404 = vmax.f32 %v386, 0.0
      %v405 = vmax.f32 %v388, 0.0
      %v406 = vmax.f32 %v392, 0.0
      %v407 = vmax.f32 %v394, 0.0
      %v408 = vmax.f32 %v398, 0.0
      %v409 = vmax.f32 %v400, 0.0
      %v410 = vld [vmem:[%s3] sm:$0xff]
      %v411 = vld [vmem:[%s3 + $0x8] sm:$0xff]
      %v412 = vld [vmem:[%s3 + $0x10] sm:$0xff]
      %v413 = vld [vmem:[%s3 + $0x18] sm:$0xff]
      %v414 = vld [vmem:[%s3 + $0x20] sm:$0xff]
      %v415 = vld [vmem:[%s3 + $0x28] sm:$0xff]
      %v416 = vld [vmem:[%s3 + $0x30] sm:$0xff]
      %v417 = vld [vmem:[%s3 + $0x38] sm:$0xff]
      %v418 = vld [vmem:[%s4] sm:$0xff]
      %v419 = vld [vmem:[%s4 + $0x8] sm:$0xff]
      %v420 = vld [vmem:[%s4 + $0x10] sm:$0xff]
      %v421 = vld [vmem:[%s4 + $0x18] sm:$0xff]
      %v422 = vld [vmem:[%s4 + $0x20] sm:$0xff]
      %v423 = vld [vmem:[%s4 + $0x28] sm:$0xff]
      %v424 = vld [vmem:[%s4 + $0x30] sm:$0xff]
      %v425 = vld [vmem:[%s4 + $0x38] sm:$0xff]
      %427 = vset.pattern.permute.xlu0 0
      %428 = vperm.xlu0 %427, %v418
      %v429 = vpop.permute.xlu0 %428
      %432 = vset.pattern.permute.xlu0 0
      %433 = vperm.xlu0 %432, %v419
      %v434 = vpop.permute.xlu0 %433
      %437 = vset.pattern.permute.xlu0 0
      %438 = vperm.xlu0 %437, %v420
      %v439 = vpop.permute.xlu0 %438
      %442 = vset.pattern.permute.xlu0 0
      %443 = vperm.xlu0 %442, %v421
      %v444 = vpop.permute.xlu0 %443
      %447 = vset.pattern.permute.xlu0 0
      %448 = vperm.xlu0 %447, %v422
      %v449 = vpop.permute.xlu0 %448
      %452 = vset.pattern.permute.xlu0 0
      %453 = vperm.xlu0 %452, %v423
      %v454 = vpop.permute.xlu0 %453
      %457 = vset.pattern.permute.xlu0 0
      %458 = vperm.xlu0 %457, %v424
      %v459 = vpop.permute.xlu0 %458
      %462 = vset.pattern.permute.xlu0 0
      %463 = vperm.xlu0 %462, %v425
      %v464 = vpop.permute.xlu0 %463
      %v467 = vsel %vm300, %v410, 0
      %v470 = vsel %vm300, %v411, 0
      %v473 = vsel %vm300, %v412, 0
      %v476 = vsel %vm300, %v413, 0
      %v479 = vsel %vm300, %v414, 0
      %v482 = vsel %vm300, %v415, 0
      %v485 = vsel %vm300, %v416, 0
      %v488 = vsel %vm300, %v417, 0
      %490 = vmatprep.subr.mxu0 %v403
      %491 = vmatpush1.msra.mxu0 %v402
      %492 = vmatprep.subr.mxu0 %v405
      %493 = vmatpush1.msra.mxu0 %v404
      %494 = vmatprep.subr.mxu0 %v407
      %495 = vmatpush1.msra.mxu0 %v406
      %496 = vmatprep.subr.mxu0 %v409
      %497 = vmatpush1.msra.mxu0 %v408
      %498 = vmatprep.subr.mxu0 0.0
      %499 = vmatpush1.msra.mxu0 0.0
      %500 = vmatprep.subr.mxu0 0.0
      %501 = vmatpush1.msra.mxu0 0.0
      %502 = vmatprep.subr.mxu0 0.0
      %503 = vmatpush1.msra.mxu0 0.0
      %504 = vmatprep.subr.mxu0 0.0
      %505 = vmatpush1.msra.mxu0 0.0
      %506 = vmatprep.subr.mxu0 0.0
      %507 = vmatpush1.msra.mxu0 0.0
      %508 = vmatprep.subr.mxu0 0.0
      %509 = vmatpush1.msra.mxu0 0.0
      %510 = vmatprep.subr.mxu0 0.0
      %511 = vmatpush1.msra.mxu0 0.0
      %512 = vmatprep.subr.mxu0 0.0
      %513 = vmatpush1.msra.mxu0 0.0
      %514 = vmatprep.subr.mxu0 0.0
      %515 = vmatpush1.msra.mxu0 0.0
      %516 = vmatprep.subr.mxu0 0.0
      %517 = vmatpush1.msra.mxu0 0.0
      %518 = vmatprep.subr.mxu0 0.0
      %519 = vmatpush1.msra.mxu0 0.0
      %520 = vmatprep.subr.mxu0 0.0
      %521 = vmatpush1.msra.mxu0 0.0
      %522 = vmatprep.subr.mxu0 0.0
      %523 = vmatpush1.msra.mxu0 0.0
      %524 = vmatprep.subr.mxu0 0.0
      %525 = vmatpush1.msra.mxu0 0.0
      %526 = vmatprep.subr.mxu0 0.0
      %527 = vmatpush1.msra.mxu0 0.0
      %528 = vmatprep.subr.mxu0 0.0
      %529 = vmatpush1.msra.mxu0 0.0
      %530 = vmatprep.subr.mxu0 0.0
      %531 = vmatpush1.msra.mxu0 0.0
      %532 = vmatprep.subr.mxu0 0.0
      %533 = vmatpush1.msra.mxu0 0.0
      %534 = vmatprep.subr.mxu0 0.0
      %535 = vmatpush1.msra.mxu0 0.0
      %536 = vmatprep.subr.mxu0 0.0
      %537 = vmatpush1.msra.mxu0 0.0
      %538 = vmatprep.subr.mxu0 0.0
      %539 = vmatpush1.msra.mxu0 0.0
      %540 = vmatprep.subr.mxu0 0.0
      %541 = vmatpush1.msra.mxu0 0.0
      %542 = vmatprep.subr.mxu0 0.0
      %543 = vmatpush1.msra.mxu0 0.0
      %544 = vmatprep.subr.mxu0 0.0
      %545 = vmatpush1.msra.mxu0 0.0
      %546 = vmatprep.subr.mxu0 0.0
      %547 = vmatpush1.msra.mxu0 0.0
      %548 = vmatprep.subr.mxu0 0.0
      %549 = vmatpush1.msra.mxu0 0.0
      %550 = vmatprep.subr.mxu0 0.0
      %551 = vmatpush1.msra.mxu0 0.0
      %552 = vmatprep.subr.mxu0 0.0
      %553 = vmatpush1.msra.mxu0 0.0
      %554 = vmatprep.mubr.f32.mxu0 0.0
      %555 = vmatmul.mubr.f32.gmra.mrb[0].mxu0 %v467
      %v556 = vpop.f32.mrb[0].mxu0
      %v557 = vadd.f32 %v429, %v556
      %v558 = vpop.f32.mrb[0].mxu0
      %v559 = vadd.f32 %v429, %v558
      %560 = vmatprep.mubr.f32.mxu0 0.0
      %561 = vmatmul.mubr.f32.gmra.mrb[0].mxu0 %v470
      %v562 = vpop.f32.mrb[0].mxu0
      %v563 = vadd.f32 %v434, %v562
      %v564 = vpop.f32.mrb[0].mxu0
      %v565 = vadd.f32 %v434, %v564
      %566 = vmatprep.mubr.f32.mxu0 0.0
      %567 = vmatmul.mubr.f32.gmra.mrb[0].mxu0 %v473
      %v568 = vpop.f32.mrb[0].mxu0
      %v569 = vadd.f32 %v439, %v568
      %v570 = vpop.f32.mrb[0].mxu0
      %v571 = vadd.f32 %v439, %v570
      %572 = vmatprep.mubr.f32.mxu0 0.0
      %573 = vmatmul.mubr.f32.gmra.mrb[0].mxu0 %v476
      %v574 = vpop.f32.mrb[0].mxu0
      %v575 = vadd.f32 %v444, %v574
      %v576 = vpop.f32.mrb[0].mxu0
      %v577 = vadd.f32 %v444, %v576
      %578 = vmatprep.mubr.f32.mxu0 0.0
      %579 = vmatmul.mubr.f32.gmra.mrb[0].mxu0 %v479
      %v580 = vpop.f32.mrb[0].mxu0
      %v581 = vadd.f32 %v449, %v580
      %v582 = vpop.f32.mrb[0].mxu0
      %v583 = vadd.f32 %v449, %v582
      %584 = vmatprep.mubr.f32.mxu0 0.0
      %585 = vmatmul.mubr.f32.gmra.mrb[0].mxu0 %v482
      %v586 = vpop.f32.mrb[0].mxu0
      %v587 = vadd.f32 %v454, %v586
      %v588 = vpop.f32.mrb[0].mxu0
      %v589 = vadd.f32 %v454, %v588
      %590 = vmatprep.mubr.f32.mxu0 0.0
      %591 = vmatmul.mubr.f32.gmra.mrb[0].mxu0 %v485
      %v592 = vpop.f32.mrb[0].mxu0
      %v593 = vadd.f32 %v459, %v592
      %v594 = vpop.f32.mrb[0].mxu0
      %v595 = vadd.f32 %v459, %v594
      %596 = vmatprep.mubr.f32.mxu0 0.0
      %597 = vmatmul.mubr.f32.gmra.mrb[0].mxu0 %v488
      %v598 = vpop.f32.mrb[0].mxu0
      %v599 = vadd.f32 %v464, %v598
      %v600 = vpop.f32.mrb[0].mxu0
      %v601 = vadd.f32 %v464, %v600
      %602 = vdwg.mxu0
      %v603 = vmul.f32 %v557, %v557
      %v604 = vmul.f32 %v559, %v559
      %v605 = vmul.f32 %v563, %v563
      %v606 = vmul.f32 %v565, %v565
      %v607 = vmul.f32 %v569, %v569
      %v608 = vmul.f32 %v571, %v571
      %v609 = vmul.f32 %v575, %v575
      %v610 = vmul.f32 %v577, %v577
      %v611 = vmul.f32 %v581, %v581
      %v612 = vmul.f32 %v583, %v583
      %v613 = vmul.f32 %v587, %v587
      %v614 = vmul.f32 %v589, %v589
      %v615 = vmul.f32 %v593, %v593
      %v616 = vmul.f32 %v595, %v595
      %v617 = vmul.f32 %v599, %v599
      %v618 = vmul.f32 %v601, %v601
      %v619 = vadd.f32 %v603, %v605
      %v620 = vadd.f32 %v619, %v607
      %v621 = vadd.f32 %v620, %v609
      %v622 = vadd.f32 %v621, %v611
      %v623 = vadd.f32 %v622, %v613
      %v624 = vadd.f32 %v623, %v615
      %v625 = vadd.f32 %v624, %v617
      %v626 = vrot.slane %v625, 4
      %v627 = vadd.f32 %v625, %v626
      %v628 = vrot.slane %v627, 2
      %v629 = vadd.f32 %v627, %v628
      %v630 = vrot.slane %v629, 1
      %v631 = vadd.f32 %v629, %v630
      %v632 = vadd.f32 %v604, %v606
      %v633 = vadd.f32 %v632, %v608
      %v634 = vadd.f32 %v633, %v610
      %v635 = vadd.f32 %v634, %v612
      %v636 = vadd.f32 %v635, %v614
      %v637 = vadd.f32 %v636, %v616
      %v638 = vadd.f32 %v637, %v618
      %v639 = vrot.slane %v638, 4
      %v640 = vadd.f32 %v638, %v639
      %v641 = vrot.slane %v640, 2
      %v642 = vadd.f32 %v640, %v641
      %v643 = vrot.slane %v642, 1
      %v644 = vadd.f32 %v642, %v643
      %v645 = vmax.f32 %v631, 1e-24
      %v646 = vmax.f32 %v644, 1e-24
      %v647 = vrsqrt.pop %v645
      %v648 = vrsqrt.pop %v646
      %v649 = vmul.f32 %v557, %v647
      %v650 = vmul.f32 %v559, %v648
      %v651 = vmul.f32 %v563, %v647
      %v652 = vmul.f32 %v565, %v648
      %v653 = vmul.f32 %v569, %v647
      %v654 = vmul.f32 %v571, %v648
      %v655 = vmul.f32 %v575, %v647
      %v656 = vmul.f32 %v577, %v648
      %v657 = vmul.f32 %v581, %v647
      %v658 = vmul.f32 %v583, %v648
      %v659 = vmul.f32 %v587, %v647
      %v660 = vmul.f32 %v589, %v648
      %v661 = vmul.f32 %v593, %v647
      %v662 = vmul.f32 %v595, %v648
      %v663 = vmul.f32 %v599, %v647
      %v664 = vmul.f32 %v601, %v648
      %665 = vst [vmem:[%s262] sm:$0xff] %v649
      %666 = vst [vmem:[%s262 + $0x8] sm:$0xff] %v650
      %667 = vst [vmem:[%s262 + $0x10] sm:$0xff] %v651
      %668 = vst [vmem:[%s262 + $0x18] sm:$0xff] %v652
      %669 = vst [vmem:[%s262 + $0x20] sm:$0xff] %v653
      %670 = vst [vmem:[%s262 + $0x28] sm:$0xff] %v654
      %671 = vst [vmem:[%s262 + $0x30] sm:$0xff] %v655
      %672 = vst [vmem:[%s262 + $0x38] sm:$0xff] %v656
      %673 = vst [vmem:[%s262 + $0x40] sm:$0xff] %v657
      %674 = vst [vmem:[%s262 + $0x48] sm:$0xff] %v658
      %675 = vst [vmem:[%s262 + $0x50] sm:$0xff] %v659
      %676 = vst [vmem:[%s262 + $0x58] sm:$0xff] %v660
      %677 = vst [vmem:[%s262 + $0x60] sm:$0xff] %v661
      %678 = vst [vmem:[%s262 + $0x68] sm:$0xff] %v662
      %679 = vst [vmem:[%s262 + $0x70] sm:$0xff] %v663
      %680 = vst [vmem:[%s262 + $0x78] sm:$0xff] %v664
      %s681 = smul.u32 2, %s21
      %p682 = scmp.lt.s32.totalorder %s20, 1
      %s683 = scalar_select %p682, %s20, 1
      %p684 = scmp.lt.s32.totalorder %s681, 1
      %s685 = scalar_select %p684, %s681, 1
      %s686 = smul.addr %s683, 16
      %s687 = sadd.s32 %s685, %s686
      %s688 = smul.addr %s687, 8
      %s689 = scalar_lea.vmem %s5, %s688
      // Predicated region
      $region41: #{projection_head_forward.1} parent=39 // pred_check
        %p690 = pneg %p160
      $region42: #{projection_head_forward.1} parent=39 // pred_check_branch
        %692 = sbr.rel (%p690) target = $region44
      $region43: #{projection_head_forward.1} parent=39 // pred_region
        %s693 = smul.u32 2, %s21
      $region44: #{projection_head_forward.1} parent=39 // pred_fallthru
        _
    $region40: #{projection_head_forward.1} parent=5 // pred_fallthru
      _
    %p694 = scmp.le.s32.totalorder 2, %s11
    // Predicated region
    $region45: #{projection_head_forward.1} parent=5 // pred_check
      %p695 = pneg %p694
    $region46: #{projection_head_forward.1} parent=5 // pred_check_branch
      %697 = sbr.rel (%p695) target = $region48
    $region47: #{projection_head_forward.1} parent=5 // pred_region
      %s698 = ssub.s32 %s11, 2
      // Predicated region
      $region49: #{projection_head_forward.1} parent=47 // pred_check
        %p699 = pneg %p166
      $region50: #{projection_head_forward.1} parent=47 // pred_check_branch
        %701 = sbr.rel (%p699) target = $region52
      $region51: #{projection_head_forward.1} parent=47 // pred_region
        %s702 = smul.u32 2, %s23
        %p703 = scmp.lt.s32.totalorder %s22, 1
        %s704 = scalar_select %p703, %s22, 1
        %p705 = scmp.lt.s32.totalorder %s702, 1
        %s706 = scalar_select %p705, %s702, 1
        %s707 = smul.addr %s704, 16
        %s708 = sadd.s32 %s706, %s707
        %s709 = smul.addr %s708, 8
        %s710 = scalar_lea.vmem %s5, %s709
      $region52: #{projection_head_forward.1} parent=47 // pred_fallthru
        _
    $region48: #{projection_head_forward.1} parent=5 // pred_fallthru
      _
  $region6: #{projection_head_forward.1} parent=0 // loop_footer
    %s15 = sadd.s32 1, %s11
  $region7: #{projection_head_forward.1} parent=0 // loop_footer_branch
    %10 = sbr.rel target = $region3
  $region8: #{projection_head_forward.1} parent=0 // loop_exit
    _

</llo_original>
